<compile_context>
chip_gen: v6e
topology: v6e:2x2x1
jax: 0.10.0
libtpu: 0.0.40
codegen_flags: <defaults>
</compile_context>

<pallas_src>
import math
import functools

import jax
import jax.numpy as jnp
from jax.experimental import pallas as pl
from jax.experimental.pallas import tpu as pltpu


_BYTES_F32 = 4
# Working-set budget (double-buffered tiles) kept under the scoped limit we
# request below, with ~25% headroom — safe across v5e / v6e / v7x.
_VMEM_BUDGET = 24 * 1024 * 1024
_VMEM_LIMIT = 32 * 1024 * 1024
# Above this reduction size we switch to the K-reduction (accumulator) path.
_MAX_RESIDENT_NIN = 2048


def _round_up(n, m):
    return ((n + m - 1) // m) * m


def _shrink_tiles(tm, tn, cost_fn, budget):
    """Halve tiles (keeping (8,128) alignment) until the VMEM estimate fits."""
    while cost_fn(tm, tn) > budget:
        if tm > 128:
            tm = max(128, _round_up(tm // 2, 8))
        elif tn > 128:
            tn = max(128, _round_up(tn // 2, 128))
        elif tm > 8:
            tm = max(8, _round_up(tm // 2, 8))
        else:
            break
    return tm, tn


# --------------------------------------------------------------------------
# Kernels
# --------------------------------------------------------------------------
def _rff_kernel_single_k(x_ref, xi_ref, o_ref, *, inv_sqrt_d):
    """Whole reduction dim resident: one matmul + fused cos epilogue."""
    z = jnp.dot(x_ref[...], xi_ref[...], preferred_element_type=jnp.float32)
    o_ref[...] = (inv_sqrt_d * jnp.cos(z)).astype(o_ref.dtype)


def _rff_kernel_kred_inplace(x_ref, xi_ref, o_ref, *, inv_sqrt_d):
    """K-reduction path, f32 output: accumulate into the K-resident o_ref."""
    k = pl.program_id(2)

    @pl.when(k == 0)
    def _():
        o_ref[...] = jnp.zeros_like(o_ref)

    o_ref[...] += jnp.dot(x_ref[...], xi_ref[...],
                          preferred_element_type=jnp.float32)

    @pl.when(k == pl.num_programs(2) - 1)
    def _():
        o_ref[...] = inv_sqrt_d * jnp.cos(o_ref[...])


def _rff_kernel_kred_scratch(x_ref, xi_ref, o_ref, acc_ref, *, inv_sqrt_d):
    """K-reduction path, narrow output dtype: f32 scratch accumulator."""
    k = pl.program_id(2)

    @pl.when(k == 0)
    def _():
        acc_ref[...] = jnp.zeros_like(acc_ref)

    acc_ref[...] += jnp.dot(x_ref[...], xi_ref[...],
                            preferred_element_type=jnp.float32)

    @pl.when(k == pl.num_programs(2) - 1)
    def _():
        o_ref[...] = (inv_sqrt_d * jnp.cos(acc_ref[...])).astype(o_ref.dtype)


# --------------------------------------------------------------------------
# Wrapper
# --------------------------------------------------------------------------
def random_fourier_feature_layer(x, xi, *, tm=None, tn=None, tk=None,
                                 force_k_reduction=False):
    """out[b, j] = (1/sqrt(nout)) * cos(sum_i x[b, i] * xi[i, j])"""
    B, nin = x.shape
    nin2, nout = xi.shape
    assert nin == nin2, f"xi first dim {nin2} must match x second dim {nin}"
    out_dtype = x.dtype
    inv_sqrt_d = 1.0 / math.sqrt(nout)

    use_k_reduction = force_k_reduction or (nin > _MAX_RESIDENT_NIN)

    compiler_params_2d = pltpu.CompilerParams(
        dimension_semantics=("parallel", "parallel"),
        vmem_limit_bytes=_VMEM_LIMIT,
    )

    if not use_k_reduction:
        # ---------- No K axis: full reduction dim resident in VMEM ----------
        tm = _round_up(tm, 8) if tm else min(_round_up(B, 8), 512)
        tn = _round_up(tn, 128) if tn else min(_round_up(nout, 128), 1024)
        tm = min(tm, _round_up(B, 8))
        tn = min(tn, _round_up(nout, 128))

        def cost(m, n):  # double-buffered x, xi and out tiles (f32)
            return _BYTES_F32 * (2 * m * nin + 2 * nin * n + 2 * m * n)

        tm, tn = _shrink_tiles(tm, tn, cost, _VMEM_BUDGET)

        B_pad = _round_up(B, tm)
        N_pad = _round_up(nout, tn)
        x_p = x if B_pad == B else jnp.pad(x, ((0, B_pad - B), (0, 0)))
        xi_p = xi if N_pad == nout else jnp.pad(xi, ((0, 0), (0, N_pad - nout)))

        kernel = functools.partial(_rff_kernel_single_k, inv_sqrt_d=inv_sqrt_d)
        out = pl.pallas_call(
            kernel,
            out_shape=jax.ShapeDtypeStruct((B_pad, N_pad), out_dtype),
            grid_spec=pltpu.PrefetchScalarGridSpec(
                num_scalar_prefetch=0,
                # batch axis innermost -> xi block index (0, j) is invariant
                # across consecutive steps, so its DMA is skipped (resident).
                grid=(N_pad // tn, B_pad // tm),
                in_specs=[
                    pl.BlockSpec((tm, nin), lambda j, i: (i, 0)),
                    pl.BlockSpec((nin, tn), lambda j, i: (0, j)),
                ],
                out_specs=pl.BlockSpec((tm, tn), lambda j, i: (i, j)),
            ),
            compiler_params=compiler_params_2d,
        )(x_p, xi_p)

    else:
        # ---------- K-reduction fallback for very large nin ----------------
        tk = _round_up(tk, 128) if tk else min(_round_up(nin, 128), 512)
        tm = _round_up(tm, 8) if tm else min(_round_up(B, 8), 512)
        tn = _round_up(tn, 128) if tn else min(_round_up(nout, 128), 512)
        tm = min(tm, _round_up(B, 8))
        tn = min(tn, _round_up(nout, 128))
        tk = min(tk, _round_up(nin, 128))

        acc_in_out = jnp.dtype(out_dtype) == jnp.float32
        extra_acc = 0 if acc_in_out else 1

        def cost(m, n):
            return _BYTES_F32 * (2 * m * tk + 2 * tk * n + (2 + extra_acc) * m * n)

        tm, tn = _shrink_tiles(tm, tn, cost, _VMEM_BUDGET)

        B_pad = _round_up(B, tm)
        N_pad = _round_up(nout, tn)
        K_pad = _round_up(nin, tk)
        x_p = x
        if (B_pad, K_pad) != (B, nin):
            x_p = jnp.pad(x, ((0, B_pad - B), (0, K_pad - nin)))
        xi_p = xi
        if (K_pad, N_pad) != (nin, nout):
            xi_p = jnp.pad(xi, ((0, K_pad - nin), (0, N_pad - nout)))

        if acc_in_out:
            kernel = functools.partial(_rff_kernel_kred_inplace,
                                       inv_sqrt_d=inv_sqrt_d)
            scratch = []
        else:
            kernel = functools.partial(_rff_kernel_kred_scratch,
                                       inv_sqrt_d=inv_sqrt_d)
            scratch = [pltpu.VMEM((tm, tn), jnp.float32)]

        out = pl.pallas_call(
            kernel,
            out_shape=jax.ShapeDtypeStruct((B_pad, N_pad), out_dtype),
            grid_spec=pltpu.PrefetchScalarGridSpec(
                num_scalar_prefetch=0,
                grid=(N_pad // tn, B_pad // tm, K_pad // tk),
                in_specs=[
                    pl.BlockSpec((tm, tk), lambda j, i, k: (i, k)),
                    pl.BlockSpec((tk, tn), lambda j, i, k: (k, j)),
                ],
                out_specs=pl.BlockSpec((tm, tn), lambda j, i, k: (i, j)),
                scratch_shapes=scratch,
            ),
            compiler_params=pltpu.CompilerParams(
                dimension_semantics=("parallel", "parallel", "arbitrary"),
                vmem_limit_bytes=_VMEM_LIMIT,
            ),
        )(x_p, xi_p)

    if out.shape != (B, nout):
        out = out[:B, :nout]
    return out


# --------------------------------------------------------------------------
# Demo / self-check
# --------------------------------------------------------------------------
if __name__ == "__main__":
    key = jax.random.PRNGKey(0)

    def _ref(x, xi):
        nout = xi.shape[1]
        return (1.0 / math.sqrt(nout)) * jnp.cos(x @ xi)

    # Case 1: aligned shapes, default (no-K) path.  x: (batch, nin), xi: (nin, nout).
    batch, nin, nout, sigma = 8, 32, 128, 1.0
    kx, kxi, key = jax.random.split(key, 3)
    x = jax.random.normal(kx, (batch, nin), dtype=jnp.float32)
    xi = jax.random.normal(kxi, (nin, nout), dtype=jnp.float32) * sigma

    out = jax.block_until_ready(random_fourier_feature_layer(x, xi))
    assert out.shape == (batch, nout)
    assert jnp.allclose(out, _ref(x, xi), atol=1e-4, rtol=1e-4), "case 1 mismatch"

    # Case 2: non-aligned shapes exercise the pad-and-slice path.
    b2, n2in, n2out = 5, 17, 200
    kx2, kxi2, key = jax.random.split(key, 3)
    x2 = jax.random.normal(kx2, (b2, n2in), dtype=jnp.float32)
    xi2 = jax.random.normal(kxi2, (n2in, n2out), dtype=jnp.float32)

    out2 = jax.block_until_ready(random_fourier_feature_layer(x2, xi2))
    assert out2.shape == (b2, n2out)
    assert jnp.allclose(out2, _ref(x2, xi2), atol=1e-4, rtol=1e-4), "case 2 mismatch"

    # Case 3: exercise the K-reduction fallback (forced, small tk -> 2 K steps).
    b3, n3in, n3out = 8, 256, 128
    kx3, kxi3, key = jax.random.split(key, 3)
    x3 = jax.random.normal(kx3, (b3, n3in), dtype=jnp.float32)
    xi3 = jax.random.normal(kxi3, (n3in, n3out), dtype=jnp.float32)

    out3 = jax.block_until_ready(
        random_fourier_feature_layer(x3, xi3, tk=128, force_k_reduction=True))
    assert out3.shape == (b3, n3out)
    assert jnp.allclose(out3, _ref(x3, xi3), atol=1e-4, rtol=1e-4), "case 3 mismatch"

    print("KERNEL_OK")
</pallas_src>

<mosaic_0001>
module attributes {stable_mosaic.version = 11 : i64} {
  func.func @_rff_kernel_single_k(%arg0: i32, %arg1: i32, %arg2: memref<8x32xf32, #tpu.memory_space<vmem>>, %arg3: memref<32x128xf32, #tpu.memory_space<vmem>>, %arg4: memref<8x128xf32, #tpu.memory_space<vmem>>) attributes {dimension_semantics = [#tpu.dimension_semantics<parallel>, #tpu.dimension_semantics<parallel>], iteration_bounds = array<i64: 1, 1>, scalar_prefetch = 0 : i64, scratch_operands = 0 : i64, tpu.core_type = #tpu.core_type<tc>, window_params = [{transform_indices = @transform_0, window_bounds = array<i64: 8, 32>}, {transform_indices = @transform_1, window_bounds = array<i64: 32, 128>}, {transform_indices = @transform_2, window_bounds = array<i64: 8, 128>}]} {
    %c0 = arith.constant 0 : index
    %c0_0 = arith.constant 0 : index
    %0 = vector.load %arg2[%c0, %c0_0] : memref<8x32xf32, #tpu.memory_space<vmem>>, vector<8x32xf32>
    %c0_1 = arith.constant 0 : index
    %c0_2 = arith.constant 0 : index
    %1 = vector.load %arg3[%c0_1, %c0_2] : memref<32x128xf32, #tpu.memory_space<vmem>>, vector<32x128xf32>
    %cst = arith.constant dense<0.000000e+00> : vector<8x128xf32>
    %2 = tpu.matmul %0, %1, %cst {dimension_numbers = #tpu.dot_dimension_numbers<[1], [0], [0], [1], [0, 0, 1, 1], [], []>} : vector<8x32xf32>, vector<32x128xf32>, vector<8x128xf32> -> vector<8x128xf32>
    %3 = math.cos %2 : vector<8x128xf32>
    %cst_3 = arith.constant 0.0883883461 : f32
    %4 = vector.broadcast %cst_3 : f32 to vector<8x128xf32>
    %5 = arith.mulf %4, %3 : vector<8x128xf32>
    %c0_4 = arith.constant 0 : index
    %c0_5 = arith.constant 0 : index
    %6 = vector.load %arg4[%c0_4, %c0_5] : memref<8x128xf32, #tpu.memory_space<vmem>>, vector<8x128xf32>
    tpu.vector_store %arg4[%c0_4, %c0_5], %5 {strides = array<i32>} : memref<8x128xf32, #tpu.memory_space<vmem>>, vector<8x128xf32>,
    return
  }
  func.func @transform_0(%arg0: i32, %arg1: i32) -> (i32, i32) {
    %c0_i32 = arith.constant 0 : i32
    %c0_i32_0 = arith.constant 0 : i32
    return %arg1, %c0_i32 : i32, i32
  }
  func.func @transform_1(%arg0: i32, %arg1: i32) -> (i32, i32) {
    %c0_i32 = arith.constant 0 : i32
    %c0_i32_0 = arith.constant 0 : i32
    return %c0_i32, %arg0 : i32, i32
  }
  func.func @transform_2(%arg0: i32, %arg1: i32) -> (i32, i32) {
    %c0_i32 = arith.constant 0 : i32
    return %arg1, %arg0 : i32, i32
  }
}

</mosaic_0001>

<llo_original>
// kernel: tpu_custom_call.1
$region0: #{tpu_custom_call.1}
  #allocation0 [shape = 'u32[]', space=smem, size = 0x4, offset = 0x4, fixed_abs, tag = 'smem constant byte address 0x4 - core index']
  #allocation1 [shape = 'u32[144,128]{1,0:T(1,128)}', space=vmem, size = 0x12000, scoped, tag = 'internal scratch']
  %s0 = inlined_call_operand.hbm [shape: f32[8,32], index: 0, kind: input, shape index: {}]
  %s1 = inlined_call_operand.hbm [shape: f32[32,128], index: 1, kind: input, shape index: {}]
  %s2 = inlined_call_operand.hbm [shape: f32[8,128], index: 2, kind: output, shape index: {}]
  %s3 = sld [smem:[#allocation0]]
  $region26: #{tpu_custom_call.1} parent=0
    _
  %s5 = ssub.s32 1, %s3
  %s6 = scalar_select 0, %s5, %s3
  $region1: #{tpu_custom_call.1} parent=0
    #allocation2 [shape = 'u8[4096]{0}', space=vmem, size = 0x1000, scoped, tag = 'input window, operand 0, single buffered']
    #allocation3 [shape = 's32[1]{0}', space=sflag, size = 0x4, scoped, tag = 'scoped memory for tpu_custom_call.1']
    #allocation4 [shape = 's32[1]{0}', space=sflag, size = 0x4, scoped, tag = 'scoped memory for tpu_custom_call.1']
    #allocation5 [shape = 'u8[16384]{0}', space=vmem, size = 0x4000, scoped, tag = 'input window, operand 1, single buffered']
    #allocation6 [shape = 's32[1]{0}', space=sflag, size = 0x4, scoped, tag = 'scoped memory for tpu_custom_call.1']
    #allocation7 [shape = 'u8[4096]{0}', space=vmem, size = 0x1000, scoped, tag = 'output window, operand 0, single buffered']
    %7 = vsyncpa [#allocation3], 0
    %8 = vsyncpa [#allocation6], 0
    %9 = vsyncpa [#allocation4], 0
    // Predicated region
    $region2: #{tpu_custom_call.1} parent=1 // pred_check
      _
    $region3: #{tpu_custom_call.1} parent=1 // pred_check_branch
      %11 = sbr.rel (0) target = $region5
    $region4: #{tpu_custom_call.1} parent=1 // pred_region
      %s13 = ssub.s32 128, 128
      %14 = vsyncadd [#allocation3], %s13
      %s16 = sshll.u32 [#allocation2], 4
      %s17 = int_to_ptr.vmem [resolvable:$true] %s16
      %19 = dma.hbm_to_vmem [thread:$0]  %s0, 128, %s17, [#allocation3]
    $region5: #{tpu_custom_call.1} parent=1 // pred_fallthru
      _
    // Predicated region
    $region6: #{tpu_custom_call.1} parent=1 // pred_check
      _
    $region7: #{tpu_custom_call.1} parent=1 // pred_check_branch
      %21 = sbr.rel (0) target = $region9
    $region8: #{tpu_custom_call.1} parent=1 // pred_region
      %s23 = ssub.s32 512, 512
      %24 = vsyncadd [#allocation6], %s23
      %s25 = sshll.u32 [#allocation5], 4
      %s26 = int_to_ptr.vmem [resolvable:$true] %s25
      %31 = dma.hbm_to_vmem [thread:$0]  %s1, 512, %s26, [#allocation6], 128, 128, 8
    $region9: #{tpu_custom_call.1} parent=1 // pred_fallthru
      _
    // Predicated region
    $region10: #{tpu_custom_call.1} parent=1 // pred_check
      _
    $region11: #{tpu_custom_call.1} parent=1 // pred_check_branch
      %33 = sbr.rel (0) target = $region13
    $region12: #{tpu_custom_call.1} parent=1 // pred_region
      %34 = dma.done [#allocation3], 128
    $region13: #{tpu_custom_call.1} parent=1 // pred_fallthru
      _
    // Predicated region
    $region14: #{tpu_custom_call.1} parent=1 // pred_check
      _
    $region15: #{tpu_custom_call.1} parent=1 // pred_check_branch
      %36 = sbr.rel (0) target = $region17
    $region16: #{tpu_custom_call.1} parent=1 // pred_region
      %37 = dma.done [#allocation6], 512
    $region17: #{tpu_custom_call.1} parent=1 // pred_fallthru
      _
    %v38 = vld [vmem:[#allocation2] sm:$0xff]
    %v39 = vld [vmem:[#allocation5] sm:$0xff]
    %v40 = vld [vmem:[#allocation5 + $0x8] sm:$0xff]
    %v41 = vld [vmem:[#allocation5 + $0x10] sm:$0xff]
    %v42 = vld [vmem:[#allocation5 + $0x18] sm:$0xff]
    %vm43 = vcmask 261120
    %v45 = vsel %vm43, %v38, 0
    %47 = vmatprep.subr.mxu0 0.0
    %48 = vmatpush1.msra.mxu0 0.0
    %49 = vmatprep.subr.mxu0 0.0
    %50 = vmatpush1.msra.mxu0 0.0
    %51 = vmatprep.subr.mxu0 0.0
    %52 = vmatpush1.msra.mxu0 0.0
    %53 = vmatprep.subr.mxu0 0.0
    %54 = vmatpush1.msra.mxu0 0.0
    %55 = vmatprep.subr.mxu0 0.0
    %56 = vmatpush1.msra.mxu0 0.0
    %57 = vmatprep.subr.mxu0 0.0
    %58 = vmatpush1.msra.mxu0 0.0
    %59 = vmatprep.subr.mxu0 0.0
    %60 = vmatpush1.msra.mxu0 0.0
    %61 = vmatprep.subr.mxu0 0.0
    %62 = vmatpush1.msra.mxu0 0.0
    %63 = vmatprep.subr.mxu0 0.0
    %64 = vmatpush1.msra.mxu0 0.0
    %65 = vmatprep.subr.mxu0 0.0
    %66 = vmatpush1.msra.mxu0 0.0
    %67 = vmatprep.subr.mxu0 0.0
    %68 = vmatpush1.msra.mxu0 0.0
    %69 = vmatprep.subr.mxu0 0.0
    %70 = vmatpush1.msra.mxu0 0.0
    %71 = vmatprep.subr.mxu0 0.0
    %72 = vmatpush1.msra.mxu0 %v42
    %73 = vmatprep.subr.mxu0 0.0
    %74 = vmatpush1.msra.mxu0 %v41
    %75 = vmatprep.subr.mxu0 0.0
    %76 = vmatpush1.msra.mxu0 %v40
    %77 = vmatprep.subr.mxu0 0.0
    %78 = vmatpush1.msra.mxu0 %v39
    %79 = vmatprep.subr.mxu0 0.0
    %80 = vmatpush2.msra.mxu0 0.0
    %81 = vmatprep.subr.mxu0 0.0
    %82 = vmatpush2.msra.mxu0 0.0
    %83 = vmatprep.subr.mxu0 0.0
    %84 = vmatpush2.msra.mxu0 0.0
    %85 = vmatprep.subr.mxu0 0.0
    %86 = vmatpush2.msra.mxu0 0.0
    %87 = vmatprep.subr.mxu0 0.0
    %88 = vmatpush2.msra.mxu0 0.0
    %89 = vmatprep.subr.mxu0 0.0
    %90 = vmatpush2.msra.mxu0 0.0
    %91 = vmatprep.subr.mxu0 0.0
    %92 = vmatpush2.msra.mxu0 0.0
    %93 = vmatprep.subr.mxu0 0.0
    %94 = vmatpush2.msra.mxu0 0.0
    %95 = vmatprep.subr.mxu0 0.0
    %96 = vmatpush2.msra.mxu0 0.0
    %97 = vmatprep.subr.mxu0 0.0
    %98 = vmatpush2.msra.mxu0 0.0
    %99 = vmatprep.subr.mxu0 0.0
    %100 = vmatpush2.msra.mxu0 0.0
    %101 = vmatprep.subr.mxu0 0.0
    %102 = vmatpush2.msra.mxu0 0.0
    %103 = vmatprep.subr.mxu0 0.0
    %104 = vmatpush2.msra.mxu0 0.0
    %105 = vmatprep.subr.mxu0 0.0
    %106 = vmatpush2.msra.mxu0 0.0
    %107 = vmatprep.subr.mxu0 0.0
    %108 = vmatpush2.msra.mxu0 0.0
    %109 = vmatprep.subr.mxu0 0.0
    %110 = vmatpush2.msra.mxu0 0.0
    %111 = vmatprep.mubr.f32.mxu0 0.0
    %112 = vmatmul.mubr.f32.gmra.mxu0 %v45
    %v113 = vpop.f32.mrf.mxu0
    %v114 = vadd.f32 0.0, %v113
    %v115 = vpop.f32.mrf.mxu0
    %116 = vdwg.mxu0
    %v117 = vand.u32 2147483647, %v114
    %vm118 = vcmp.le.f32.partialorder %v117, 0.7853982
    %vm119 = vcmp.lt.s32.totalorder %v114, 0
    %v120 = vand.u32 %v114, 2139095040
    %v121 = vshrl.u32 %v120, 23
    %v122 = vsub.s32 %v121, 127
    %v123 = vand.u32 2147483647, %v114
    %v124 = vand.u32 %v123, 8388607
    %v125 = vor.u32 %v124, 8388608
    %v126 = vsub.s32 0, %v125
    %v127 = vadd.s32 %v122, 1
    %vm128 = vcmp.gt.s32.totalorder %v127, 0
    %v129 = vsel %vm128, %v127, 0
    %v130 = vshrl.u32 %v129, 5
    %v131 = vand.u32 %v129, 31
    %v132 = vsub.s32 32, %v131
    %v133 = vshrl.u32 683565275, %v132
    %v134 = vshll.u32 683565275, %v131
    %v135 = vshrl.u32 2475754826, %v132
    %v136 = vor.u32 %v134, %v135
    %v137 = vshll.u32 2475754826, %v131
    %v138 = vshrl.u32 2131351028, %v132
    %v139 = vor.u32 %v137, %v138
    %v140 = vshll.u32 2131351028, %v131
    %v141 = vshrl.u32 2102212464, %v132
    %v142 = vor.u32 %v140, %v141
    %v143 = vshll.u32 2102212464, %v131
    %v144 = vshrl.u32 920167782, %v132
    %v145 = vor.u32 %v143, %v144
    %v146 = vshll.u32 920167782, %v131
    %v147 = vshrl.u32 1326507024, %v132
    %v148 = vor.u32 %v146, %v147
    %vm149 = vcmp.lt.s32.totalorder %v130, 1
    %vm150 = vcmp.lt.s32.totalorder %v130, 2
    %vm151 = vcmp.lt.s32.totalorder %v130, 3
    %vm152 = vcmp.lt.s32.totalorder %v130, 4
    %v153 = vsel %vm149, %v133, %v136
    %v154 = vsel %vm152, %v142, 2102212464
    %v155 = vsel %vm151, %v139, %v154
    %v156 = vsel %vm150, %v153, %v155
    %v157 = vsel %vm149, %v136, %v139
    %v158 = vsel %vm152, %v145, 920167782
    %v159 = vsel %vm151, %v142, %v158
    %v160 = vsel %vm150, %v157, %v159
    %v161 = vsel %vm149, %v139, %v142
    %v162 = vsel %vm152, %v148, 1326507024
    %v163 = vsel %vm151, %v145, %v162
    %v164 = vsel %vm150, %v161, %v163
    %v165 = vshll.u32 %v125, 8
    %v166 = vmul.u32.u64.compose %v165, %v164
    %v167 = vextract.low.u32 %v166
    %v168 = vextract.high.u32 %v166
    %v169 = vmul.u32.u64.compose %v165, %v160
    %v170 = vextract.low.u32 %v169
    %v171 = vextract.high.u32 %v169
    %v172 = vmul.u32 %v165, %v156
    %v173 = vadd.s32 %v168, %v170
    %vm174 = vc.u32 %v168, %v170
    %v175 = vadd.s32 %v171, 1
    %v176 = vsel %vm174, %v175, %v171
    %v177 = vadd.s32 %v172, %v176
    %v178 = vadd.s32 %v177, 536870912
    %v179 = vshrl.u32 %v178, 30
    %v180 = vshll.u32 %v179, 30
    %v181 = vsub.s32 %v177, %v180
    %vm182 = vcmp.lt.s32.totalorder %v181, 0
    %v183 = vsub.s32 0, %v181
    %v184 = vsel %vm182, %v183, %v181
    %v185 = vclz %v184
    %v186 = vsub.s32 %v185, 2
    %vm187 = vcmp.gt.s32.totalorder 0, %v186
    %v188 = vsel %vm187, 0, %v186
    %v189 = vsub.s32 32, %v188
    %v190 = vshll.u32 %v181, %v188
    %v191 = vshrl.u32 %v173, %v189
    %v192 = vor.u32 %v190, %v191
    %v193 = vsub.s32 4294967266, %v188
    %v194 = vadd.s32 %v193, 127
    %v195 = vshll.u32 %v194, 23
    %v196 = vor.u32 4788187, %v195
    %v197 = vand.u32 2147483647, %v196
    %v199 = vcvt.s32.f32 %v192
    %v200 = vmul.f32 %v199, %v197
    %v201 = vxor.u32 %v200, 2147483648
    %v202 = vsel %vm119, %v201, %v200
    %v203 = vsub.s32 4, %v179
    %v204 = vsel %vm119, %v203, %v179
    %v205 = vsel %vm118, %v114, %v202
    %v206 = vsel %vm118, 0, %v204
    %v207 = vcosq.f32.pop %v205
    %v208 = vsinq.f32.pop %v205
    %vm209 = vweird.f32 %v114
    %v210 = vand.u32 %v206, 3
    %vm211 = vcmp.lt.s32.totalorder %v210, 2
    %vm212 = vcmp.eq.s32.totalorder %v210, 0
    %v213 = vxor.u32 %v208, 2147483648
    %v214 = vsel %vm212, %v207, %v213
    %vm215 = vcmp.eq.s32.totalorder %v210, 2
    %v216 = vxor.u32 %v207, 2147483648
    %v217 = vsel %vm215, %v216, %v208
    %v218 = vsel %vm211, %v214, %v217
    %v219 = vsel %vm209, nan, %v218
    %v220 = vmul.f32 %v219, 0.088388346
    %221 = vst [vmem:[#allocation7] sm:$0xff] %v220
    // Predicated region
    $region18: #{tpu_custom_call.1} parent=1 // pred_check
      _
    $region19: #{tpu_custom_call.1} parent=1 // pred_check_branch
      %223 = sbr.rel (0) target = $region21
    $region20: #{tpu_custom_call.1} parent=1 // pred_region
      %s225 = ssub.s32 128, 128
      %226 = vsyncadd [#allocation4], %s225
      %s228 = sshll.u32 [#allocation7], 4
      %s229 = int_to_ptr.vmem [resolvable:$true] %s228
      %231 = dma.vmem_to_hbm [thread:$0]  %s229, 128, %s2, [#allocation4]
    $region21: #{tpu_custom_call.1} parent=1 // pred_fallthru
      _
    // Predicated region
    $region22: #{tpu_custom_call.1} parent=1 // pred_check
      _
    $region23: #{tpu_custom_call.1} parent=1 // pred_check_branch
      %233 = sbr.rel (0) target = $region25
    $region24: #{tpu_custom_call.1} parent=1 // pred_region
      %234 = dma.done [#allocation4], 128
    $region25: #{tpu_custom_call.1} parent=1 // pred_fallthru
      _
    %235 = vsyncpa [#allocation3], 1
    %236 = vsyncpa [#allocation6], 1
    %237 = vsyncpa [#allocation4], 1

</llo_original>
